<compile_context>
chip_gen: v7x
topology: tpu7x:2x2x1
jax: 0.10.0
libtpu: 0.0.40
codegen_flags: <defaults>
</compile_context>

<pallas_src>
import jax
import jax.numpy as jnp
import numpy as np
from jax.experimental import pallas as pl
from jax.experimental.pallas import tpu as pltpu

SEQ_LEN = 8
BATCH = 32          # must be 32 to match the module's hard-coded `.view(-1, 32)`
HIDDEN = 32
WEIGHT = 128        # self.weight_size in the module
T_STEPS = 32        # decode timesteps batched into one pallas_call (demo)
T_BLOCK = 16        # timesteps per grid step -> output block [32, 128] is lane-dense


# ----------------------------------------------------------------------------
# Single-call kernel: exact equivalent of one module forward.
# ----------------------------------------------------------------------------
def attention1_kernel(enc_ref, hid_ref, w1t_ref, w2t_ref, vt_ref, len_ref, out_ref):
    SB, H = enc_ref.shape            # [S*B, H]
    B = hid_ref.shape[0]             # batch (== 32)
    S = SB // B                      # seq_len
    W = w1t_ref.shape[1]             # weight_size (128)

    # Two MXU matmuls (no in-kernel tile/concat relayouts).
    proj_enc = jnp.dot(enc_ref[...], w1t_ref[...],
                       preferred_element_type=jnp.float32)            # [S*B, W]
    proj_hid = jnp.dot(hid_ref[...], w2t_ref[...],
                       preferred_element_type=jnp.float32)            # [B, W]

    # Broadcast-add over S, tanh on the EUP.
    s = jnp.tanh(proj_enc.reshape(S, B, W) + proj_hid[None, :, :])    # [S, B, W]

    # vt projection: lane-dense [1, W] vt -> VPU multiply + XLU lane reduce.
    logits = jnp.sum(s * vt_ref[...][None, :, :], axis=-1)            # [S, B]

    # .view(-1, 32).transpose(0, 1) with batch == 32  -> [B, S]
    align = logits.T

    # sequence_mask(src_seq_lengths) + masked_fill_(-inf)
    pos = jax.lax.broadcasted_iota(jnp.int32, (B, S), 1)              # [B, S]
    mask = pos < len_ref[...]                                         # [B,1] broadcast
    out_ref[...] = jnp.where(mask, align, -jnp.inf)


# ----------------------------------------------------------------------------
# Batched kernel: T_BLOCK decode timesteps per grid step, lane-dense output.
# ----------------------------------------------------------------------------
def attention1_steps_kernel(enc_ref, hid_ref, w1t_ref, w2t_ref, vt_ref, len_ref,
                            out_ref):
    SB, H = enc_ref.shape            # [S*B, H]
    TB, B, _ = hid_ref.shape         # [T_BLOCK, B, H]
    S = SB // B
    W = w1t_ref.shape[1]

    proj_enc = jnp.dot(enc_ref[...], w1t_ref[...],
                       preferred_element_type=jnp.float32)            # [S*B, W]
    proj_hid = jnp.dot(hid_ref[...].reshape(TB * B, H), w2t_ref[...],
                       preferred_element_type=jnp.float32)            # [TB*B, W]

    # [1, S, B, W] + [TB, 1, B, W] -> [TB, S, B, W], tanh on the EUP.
    s = jnp.tanh(proj_enc.reshape(1, S, B, W) + proj_hid.reshape(TB, 1, B, W))

    # vt: VPU multiply + XLU lane reduce -> [TB, S, B]
    logits = jnp.sum(s * vt_ref[...], axis=-1)

    # [TB, S, B] -> [B, TB*S]: column block u*S:(u+1)*S holds step u's [B, S].
    align = jnp.transpose(logits, (2, 0, 1)).reshape(B, TB * S)

    # Same [B, S] length mask, repeated across the TB timesteps in this block.
    pos = jax.lax.broadcasted_iota(jnp.int32, (B, TB * S), 1) % S
    mask = pos < len_ref[...]                                         # [B,1] broadcast
    out_ref[...] = jnp.where(mask, align, -jnp.inf)


# ----------------------------------------------------------------------------
# Wrappers
# ----------------------------------------------------------------------------
def prepare_attention1_params(w1, w2, vt):
    """Hoist static weight transposes out of the per-call path (do once at init).

    w1, w2: [WEIGHT, HIDDEN] (PyTorch nn.Linear layout, out x in); vt: [1, WEIGHT].
    Returns (w1t [H, W], w2t [H, W], vt [1, W])."""
    return jnp.asarray(w1).T, jnp.asarray(w2).T, jnp.asarray(vt)


@jax.jit
def attention1_forward(encoder_output, hidden, w1t, w2t, vt, src_seq_lengths):
    """Module-equivalent single forward.
    encoder_output: [S, B, H] f32; hidden: [1, B, H] f32; w1t/w2t: [H, W];
    vt: [1, W]; src_seq_lengths: [B, 1] i32.  Returns align_score [B, S] f32."""
    S, B, H = encoder_output.shape
    assert B == 32, "the module's hard-coded .view(-1, 32) requires batch == 32"
    enc_flat = encoder_output.reshape(S * B, H)     # free, contiguous reshape
    hid = hidden[0]                                 # squeeze(0)

    vmem = pl.BlockSpec(memory_space=pltpu.MemorySpace.VMEM)
    return pl.pallas_call(
        attention1_kernel,
        out_shape=jax.ShapeDtypeStruct((B, S), jnp.float32),
        in_specs=[vmem] * 6,
        out_specs=vmem,
    )(enc_flat, hid, w1t, w2t, vt, src_seq_lengths)


@jax.jit
def attention1_decode_steps(encoder_output, hidden_steps, w1t, w2t, vt,
                            src_seq_lengths):
    """Amortized version: T decode timesteps in one pallas_call.
    hidden_steps: [T, B, H] (hidden.squeeze(0) for each decode step).
    Returns [B, T*S]; columns g*S:(g+1)*S are the [B, S] align score of step g."""
    S, B, H = encoder_output.shape
    T = hidden_steps.shape[0]
    W = w1t.shape[1]
    assert B == 32, "the module's hard-coded .view(-1, 32) requires batch == 32"
    assert T % T_BLOCK == 0
    enc_flat = encoder_output.reshape(S * B, H)

    return pl.pallas_call(
        attention1_steps_kernel,
        out_shape=jax.ShapeDtypeStruct((B, T * S), jnp.float32),
        grid=(T // T_BLOCK,),
        in_specs=[
            # Loop-invariant inputs: constant index_map -> stay VMEM-resident.
            pl.BlockSpec((S * B, H), lambda t: (0, 0)),        # encoder (flat)
            pl.BlockSpec((T_BLOCK, B, H), lambda t: (t, 0, 0)),  # hidden steps
            pl.BlockSpec((H, W), lambda t: (0, 0)),            # W1^T
            pl.BlockSpec((H, W), lambda t: (0, 0)),            # W2^T
            pl.BlockSpec((1, W), lambda t: (0, 0)),            # vt
            pl.BlockSpec((B, 1), lambda t: (0, 0)),            # lengths
        ],
        # Lane-dense output blocks: [32, T_BLOCK*S] = [32, 128].
        out_specs=pl.BlockSpec((B, T_BLOCK * S), lambda t: (0, t)),
        compiler_params=pltpu.CompilerParams(
            dimension_semantics=("parallel",)),   # shard timestep blocks on v7x
    )(enc_flat, hidden_steps, w1t, w2t, vt, src_seq_lengths)


# ----------------------------------------------------------------------------
# Pure-JAX references
# ----------------------------------------------------------------------------
def attention1_reference(encoder_output, hidden, w1, w2, vt, src_seq_lengths):
    hid = hidden[0]
    s = jnp.tanh(encoder_output @ w1.T + (hid @ w2.T)[None, :, :])
    logits = (s @ vt.T)[..., 0]                        # [S, B]
    align = logits.reshape(-1, 32).T                   # [32, S]  (B == 32)
    S = encoder_output.shape[0]
    pos = jnp.arange(S)[None, :]
    mask = pos < src_seq_lengths                       # [B, S]
    return jnp.where(mask, align, -jnp.inf)


def attention1_steps_reference(encoder_output, hidden_steps, w1, w2, vt, lengths):
    per_t = jax.vmap(
        lambda h: attention1_reference(encoder_output, h[None], w1, w2, vt, lengths)
    )(hidden_steps)                                    # [T, B, S]
    T, B, S = per_t.shape
    return jnp.transpose(per_t, (1, 0, 2)).reshape(B, T * S)


# ----------------------------------------------------------------------------
if __name__ == "__main__":
    key = jax.random.PRNGKey(0)
    k_enc, k_hid, k_hsteps, k_w1, k_w2, k_vt, k_len = jax.random.split(key, 7)

    encoder_output = jax.random.normal(k_enc, (SEQ_LEN, BATCH, HIDDEN), jnp.float32)
    hidden = jax.random.normal(k_hid, (1, BATCH, HIDDEN), jnp.float32)
    hidden_steps = jax.random.normal(k_hsteps, (T_STEPS, BATCH, HIDDEN), jnp.float32)

    # PyTorch nn.Linear default init: U(-1/sqrt(in), 1/sqrt(in))
    b1 = 1.0 / np.sqrt(HIDDEN)
    bv = 1.0 / np.sqrt(WEIGHT)
    w1 = jax.random.uniform(k_w1, (WEIGHT, HIDDEN), jnp.float32, -b1, b1)
    w2 = jax.random.uniform(k_w2, (WEIGHT, HIDDEN), jnp.float32, -b1, b1)
    vt = jax.random.uniform(k_vt, (1, WEIGHT), jnp.float32, -bv, bv)

    # lengths in [1, SEQ_LEN], with max == SEQ_LEN (sequence_mask width == seq_len)
    src_seq_lengths = jax.random.randint(k_len, (BATCH, 1), 1, SEQ_LEN + 1, jnp.int32)
    src_seq_lengths = src_seq_lengths.at[0, 0].set(SEQ_LEN)

    # Static weight prep done ONCE (hoisted out of the per-call path).
    w1t, w2t, vt_p = prepare_attention1_params(w1, w2, vt)
    jax.block_until_ready(w1t)

    # 1) Single-call forward (module-equivalent).
    out = attention1_forward(encoder_output, hidden, w1t, w2t, vt_p, src_seq_lengths)
    out = jax.block_until_ready(out)
    ref = attention1_reference(encoder_output, hidden, w1, w2, vt, src_seq_lengths)
    np.testing.assert_allclose(np.asarray(out), np.asarray(ref), rtol=1e-5, atol=1e-5)

    # 2) Batched decode-step version (T_STEPS forwards in one pallas_call).
    out_steps = attention1_decode_steps(encoder_output, hidden_steps,
                                        w1t, w2t, vt_p, src_seq_lengths)
    out_steps = jax.block_until_ready(out_steps)
    ref_steps = attention1_steps_reference(encoder_output, hidden_steps,
                                           w1, w2, vt, src_seq_lengths)
    np.testing.assert_allclose(np.asarray(out_steps), np.asarray(ref_steps),
                               rtol=1e-5, atol=1e-5)

    print("KERNEL_OK")
</pallas_src>

<mosaic_0001>
module attributes {stable_mosaic.version = 11 : i64} {
  func.func @attention1_kernel(%arg0: memref<256x32xf32, #tpu.memory_space<vmem>>, %arg1: memref<32x32xf32, #tpu.memory_space<vmem>>, %arg2: memref<32x128xf32, #tpu.memory_space<vmem>>, %arg3: memref<32x128xf32, #tpu.memory_space<vmem>>, %arg4: memref<1x128xf32, #tpu.memory_space<vmem>>, %arg5: memref<32x1xi32, #tpu.memory_space<vmem>>, %arg6: memref<32x8xf32, #tpu.memory_space<vmem>>) attributes {dimension_semantics = [], scalar_prefetch = 0 : i64, scratch_operands = 0 : i64, tpu.core_type = #tpu.core_type<tc>} {
    %c0 = arith.constant 0 : index
    %c0_0 = arith.constant 0 : index
    %0 = vector.load %arg0[%c0, %c0_0] : memref<256x32xf32, #tpu.memory_space<vmem>>, vector<256x32xf32>
    %c0_1 = arith.constant 0 : index
    %c0_2 = arith.constant 0 : index
    %1 = vector.load %arg2[%c0_1, %c0_2] : memref<32x128xf32, #tpu.memory_space<vmem>>, vector<32x128xf32>
    %cst = arith.constant dense<0.000000e+00> : vector<256x128xf32>
    %2 = tpu.matmul %0, %1, %cst {dimension_numbers = #tpu.dot_dimension_numbers<[1], [0], [0], [1], [0, 0, 1, 1], [], []>} : vector<256x32xf32>, vector<32x128xf32>, vector<256x128xf32> -> vector<256x128xf32>
    %c0_3 = arith.constant 0 : index
    %c0_4 = arith.constant 0 : index
    %3 = vector.load %arg1[%c0_3, %c0_4] : memref<32x32xf32, #tpu.memory_space<vmem>>, vector<32x32xf32>
    %c0_5 = arith.constant 0 : index
    %c0_6 = arith.constant 0 : index
    %4 = vector.load %arg3[%c0_5, %c0_6] : memref<32x128xf32, #tpu.memory_space<vmem>>, vector<32x128xf32>
    %cst_7 = arith.constant dense<0.000000e+00> : vector<32x128xf32>
    %5 = tpu.matmul %3, %4, %cst_7 {dimension_numbers = #tpu.dot_dimension_numbers<[1], [0], [0], [1], [0, 0, 1, 1], [], []>} : vector<32x32xf32>, vector<32x128xf32>, vector<32x128xf32> -> vector<32x128xf32>
    %6 = vector.shape_cast %2 : vector<256x128xf32> to vector<8x32x128xf32>
    %7 = vector.shape_cast %5 : vector<32x128xf32> to vector<1x32x128xf32>
    %8 = vector.broadcast %7 : vector<1x32x128xf32> to vector<8x32x128xf32>
    %9 = arith.addf %6, %8 : vector<8x32x128xf32>
    %10 = math.tanh %9 : vector<8x32x128xf32>
    %c0_8 = arith.constant 0 : index
    %c0_9 = arith.constant 0 : index
    %11 = vector.load %arg4[%c0_8, %c0_9] : memref<1x128xf32, #tpu.memory_space<vmem>>, vector<1x128xf32>
    %12 = vector.shape_cast %11 : vector<1x128xf32> to vector<1x1x128xf32>
    %13 = vector.broadcast %12 : vector<1x1x128xf32> to vector<8x32x128xf32>
    %14 = arith.mulf %10, %13 : vector<8x32x128xf32>
    %cst_10 = arith.constant dense<0.000000e+00> : vector<8x32xf32>
    %15 = vector.multi_reduction <add>, %14, %cst_10 [2] : vector<8x32x128xf32> to vector<8x32xf32>
    %16 = tpu.transpose %15, [1, 0] : vector<8x32xf32> -> vector<32x8xf32>
    %17 = tpu.iota {dimensions = array<i32: 1>} : vector<32x8xi32>
    %c0_11 = arith.constant 0 : index
    %c0_12 = arith.constant 0 : index
    %18 = vector.load %arg5[%c0_11, %c0_12] : memref<32x1xi32, #tpu.memory_space<vmem>>, vector<32x1xi32>
    %19 = vector.broadcast %18 : vector<32x1xi32> to vector<32x8xi32>
    %20 = arith.cmpi slt, %17, %19 : vector<32x8xi32>
    %cst_13 = arith.constant 0xFF800000 : f32
    %21 = vector.broadcast %cst_13 : f32 to vector<32x8xf32>
    %22 = arith.select %20, %16, %21 : vector<32x8xi1>, vector<32x8xf32>
    %c0_14 = arith.constant 0 : index
    %c0_15 = arith.constant 0 : index
    %23 = vector.load %arg6[%c0_14, %c0_15] : memref<32x8xf32, #tpu.memory_space<vmem>>, vector<32x8xf32>
    tpu.vector_store %arg6[%c0_14, %c0_15], %22 {strides = array<i32>} : memref<32x8xf32, #tpu.memory_space<vmem>>, vector<32x8xf32>,
    return
  }
}

</mosaic_0001>

<llo_original>
// kernel: attention1_forward.1
$region0: #{attention1_forward.1}
  #allocation0 [shape = 'u32[]', space=smem, size = 0x4, offset = 0x4, fixed_abs, tag = 'smem constant byte address 0x4 - core index']
  #allocation1 [shape = 'u32[144,128]{1,0:T(1,128)}', space=vmem, size = 0x12000, scoped, tag = 'internal scratch']
  %s0 = inlined_call_operand.hbm [shape: f32[256,32], index: 0, kind: input, shape index: {}]
  %s1 = inlined_call_operand.vmem [shape: f32[32,32], index: 1, kind: input, shape index: {}]
  %s2 = inlined_call_operand.hbm [shape: f32[32,128], index: 2, kind: input, shape index: {}]
  %s3 = inlined_call_operand.hbm [shape: f32[32,128], index: 3, kind: input, shape index: {}]
  %s4 = inlined_call_operand.vmem [shape: f32[1,128], index: 4, kind: input, shape index: {}]
  %s5 = inlined_call_operand.vmem [shape: s32[32,1], index: 5, kind: input, shape index: {}]
  %s6 = inlined_call_operand.vmem [shape: f32[32,8], index: 6, kind: output, shape index: {}]
  %s7 = sld [smem:[#allocation0]]
  $region46: #{attention1_forward.1} parent=0
    _
  %s9 = ssub.s32 1, %s7
  %s10 = scalar_select 0, %s9, %s7
  $region1: #{attention1_forward.1} parent=0
    #allocation2 [shape = 'u8[131072]{0}', space=vmem, size = 0x20000, scoped, tag = 'input window, operand 0, single buffered']
    #allocation3 [shape = 's32[1]{0}', space=sflag, size = 0x4, scoped, tag = 'scoped memory for attention1_forward.1']
    #allocation4 [shape = 'u8[16384]{0}', space=vmem, size = 0x4000, scoped, tag = 'input window, operand 2, single buffered']
    #allocation5 [shape = 's32[1]{0}', space=sflag, size = 0x4, scoped, tag = 'scoped memory for attention1_forward.1']
    #allocation6 [shape = 'u8[16384]{0}', space=vmem, size = 0x4000, scoped, tag = 'input window, operand 3, single buffered']
    %11 = vsyncpa [#allocation3], 0
    %12 = vsyncpa [#allocation5], 0
    // Predicated region
    $region2: #{attention1_forward.1} parent=1 // pred_check
      _
    $region3: #{attention1_forward.1} parent=1 // pred_check_branch
      %14 = sbr.rel (0) target = $region5
    $region4: #{attention1_forward.1} parent=1 // pred_region
      %s16 = ssub.s32 4096, 4096
      %17 = vsyncadd [#allocation3], %s16
      %s18 = sshll.u32 [#allocation2], 4
      %s19 = int_to_ptr.vmem [resolvable:$true] %s18
      %24 = dma.hbm_to_vmem [thread:$0]  %s0, 4096, %s19, [#allocation3], 128, 128, 8
    $region5: #{attention1_forward.1} parent=1 // pred_fallthru
      _
    // Predicated region
    $region6: #{attention1_forward.1} parent=1 // pred_check
      _
    $region7: #{attention1_forward.1} parent=1 // pred_check_branch
      %26 = sbr.rel (0) target = $region9
    $region8: #{attention1_forward.1} parent=1 // pred_region
      _
    $region9: #{attention1_forward.1} parent=1 // pred_fallthru
      _
    // Predicated region
    $region10: #{attention1_forward.1} parent=1 // pred_check
      _
    $region11: #{attention1_forward.1} parent=1 // pred_check_branch
      %28 = sbr.rel (0) target = $region13
    $region12: #{attention1_forward.1} parent=1 // pred_region
      %s30 = ssub.s32 512, 512
      %31 = vsyncadd [#allocation5], %s30
      %s32 = sshll.u32 [#allocation4], 4
      %s33 = int_to_ptr.vmem [resolvable:$true] %s32
      %38 = dma.hbm_to_vmem [thread:$0]  %s2, 512, %s33, [#allocation5], 128, 128, 8
    $region13: #{attention1_forward.1} parent=1 // pred_fallthru
      _
    // Predicated region
    $region14: #{attention1_forward.1} parent=1 // pred_check
      _
    $region15: #{attention1_forward.1} parent=1 // pred_check_branch
      %40 = sbr.rel (0) target = $region17
    $region16: #{attention1_forward.1} parent=1 // pred_region
      %s42 = ssub.s32 512, 512
      %43 = vsyncadd [#allocation5], %s42
      %s44 = sshll.u32 [#allocation6], 4
      %s45 = int_to_ptr.vmem [resolvable:$true] %s44
      %50 = dma.hbm_to_vmem [thread:$0]  %s3, 512, %s45, [#allocation5], 128, 128, 8
    $region17: #{attention1_forward.1} parent=1 // pred_fallthru
      _
    // Predicated region
    $region18: #{attention1_forward.1} parent=1 // pred_check
      _
    $region19: #{attention1_forward.1} parent=1 // pred_check_branch
      %52 = sbr.rel (0) target = $region21
    $region20: #{attention1_forward.1} parent=1 // pred_region
      _
    $region21: #{attention1_forward.1} parent=1 // pred_fallthru
      _
    // Predicated region
    $region22: #{attention1_forward.1} parent=1 // pred_check
      _
    $region23: #{attention1_forward.1} parent=1 // pred_check_branch
      %54 = sbr.rel (0) target = $region25
    $region24: #{attention1_forward.1} parent=1 // pred_region
      _
    $region25: #{attention1_forward.1} parent=1 // pred_fallthru
      _
    // Predicated region
    $region26: #{attention1_forward.1} parent=1 // pred_check
      _
    $region27: #{attention1_forward.1} parent=1 // pred_check_branch
      %56 = sbr.rel (0) target = $region29
    $region28: #{attention1_forward.1} parent=1 // pred_region
      %57 = dma.done [#allocation3], 4096
    $region29: #{attention1_forward.1} parent=1 // pred_fallthru
      _
    // Predicated region
    $region30: #{attention1_forward.1} parent=1 // pred_check
      _
    $region31: #{attention1_forward.1} parent=1 // pred_check_branch
      %59 = sbr.rel (0) target = $region33
    $region32: #{attention1_forward.1} parent=1 // pred_region
      %60 = dma.done [#allocation5], 512
    $region33: #{attention1_forward.1} parent=1 // pred_fallthru
      _
    // Predicated region
    $region34: #{attention1_forward.1} parent=1 // pred_check
      _
    $region35: #{attention1_forward.1} parent=1 // pred_check_branch
      %62 = sbr.rel (0) target = $region37
    $region36: #{attention1_forward.1} parent=1 // pred_region
      %63 = dma.done [#allocation5], 512
    $region37: #{attention1_forward.1} parent=1 // pred_fallthru
      _
    %v64 = vld [vmem:[#allocation2] sm:$0xff]
    %v65 = vld [vmem:[#allocation2 + $0x8] sm:$0xff]
    %v66 = vld [vmem:[#allocation2 + $0x10] sm:$0xff]
    %v67 = vld [vmem:[#allocation2 + $0x18] sm:$0xff]
    %v68 = vld [vmem:[#allocation2 + $0x20] sm:$0xff]
    %v69 = vld [vmem:[#allocation2 + $0x28] sm:$0xff]
    %v70 = vld [vmem:[#allocation2 + $0x30] sm:$0xff]
    %v71 = vld [vmem:[#allocation2 + $0x38] sm:$0xff]
    %v72 = vld [vmem:[#allocation2 + $0x40] sm:$0xff]
    %v73 = vld [vmem:[#allocation2 + $0x48] sm:$0xff]
    %v74 = vld [vmem:[#allocation2 + $0x50] sm:$0xff]
    %v75 = vld [vmem:[#allocation2 + $0x58] sm:$0xff]
    %v76 = vld [vmem:[#allocation2 + $0x60] sm:$0xff]
    %v77 = vld [vmem:[#allocation2 + $0x68] sm:$0xff]
    %v78 = vld [vmem:[#allocation2 + $0x70] sm:$0xff]
    %v79 = vld [vmem:[#allocation2 + $0x78] sm:$0xff]
    %v80 = vld [vmem:[#allocation2 + $0x80] sm:$0xff]
    %v81 = vld [vmem:[#allocation2 + $0x88] sm:$0xff]
    %v82 = vld [vmem:[#allocation2 + $0x90] sm:$0xff]
    %v83 = vld [vmem:[#allocation2 + $0x98] sm:$0xff]
    %v84 = vld [vmem:[#allocation2 + $0xa0] sm:$0xff]
    %v85 = vld [vmem:[#allocation2 + $0xa8] sm:$0xff]
    %v86 = vld [vmem:[#allocation2 + $0xb0] sm:$0xff]
    %v87 = vld [vmem:[#allocation2 + $0xb8] sm:$0xff]
    %v88 = vld [vmem:[#allocation2 + $0xc0] sm:$0xff]
    %v89 = vld [vmem:[#allocation2 + $0xc8] sm:$0xff]
    %v90 = vld [vmem:[#allocation2 + $0xd0] sm:$0xff]
    %v91 = vld [vmem:[#allocation2 + $0xd8] sm:$0xff]
    %v92 = vld [vmem:[#allocation2 + $0xe0] sm:$0xff]
    %v93 = vld [vmem:[#allocation2 + $0xe8] sm:$0xff]
    %v94 = vld [vmem:[#allocation2 + $0xf0] sm:$0xff]
    %v95 = vld [vmem:[#allocation2 + $0xf8] sm:$0xff]
    %v96 = vld [vmem:[#allocation4] sm:$0xff]
    %v97 = vld [vmem:[#allocation4 + $0x8] sm:$0xff]
    %v98 = vld [vmem:[#allocation4 + $0x10] sm:$0xff]
    %v99 = vld [vmem:[#allocation4 + $0x18] sm:$0xff]
    %vm100 = vcmask 261120
    %v102 = vsel %vm100, %v64, 0
    %v105 = vsel %vm100, %v65, 0
    %v108 = vsel %vm100, %v66, 0
    %v111 = vsel %vm100, %v67, 0
    %v114 = vsel %vm100, %v68, 0
    %v117 = vsel %vm100, %v69, 0
    %v120 = vsel %vm100, %v70, 0
    %v123 = vsel %vm100, %v71, 0
    %v126 = vsel %vm100, %v72, 0
    %v129 = vsel %vm100, %v73, 0
    %v132 = vsel %vm100, %v74, 0
    %v135 = vsel %vm100, %v75, 0
    %v138 = vsel %vm100, %v76, 0
    %v141 = vsel %vm100, %v77, 0
    %v144 = vsel %vm100, %v78, 0
    %v147 = vsel %vm100, %v79, 0
    %v150 = vsel %vm100, %v80, 0
    %v153 = vsel %vm100, %v81, 0
    %v156 = vsel %vm100, %v82, 0
    %v159 = vsel %vm100, %v83, 0
    %v162 = vsel %vm100, %v84, 0
    %v165 = vsel %vm100, %v85, 0
    %v168 = vsel %vm100, %v86, 0
    %v171 = vsel %vm100, %v87, 0
    %v174 = vsel %vm100, %v88, 0
    %v177 = vsel %vm100, %v89, 0
    %v180 = vsel %vm100, %v90, 0
    %v183 = vsel %vm100, %v91, 0
    %v186 = vsel %vm100, %v92, 0
    %v189 = vsel %vm100, %v93, 0
    %v192 = vsel %vm100, %v94, 0
    %v195 = vsel %vm100, %v95, 0
    %197 = vmatprep.subr.mxu0 0.0
    %198 = vmatpush1.msra.mxu0 %v96
    %199 = vmatprep.subr.mxu0 0.0
    %200 = vmatpush1.msra.mxu0 %v97
    %201 = vmatprep.subr.mxu0 0.0
    %202 = vmatpush1.msra.mxu0 %v98
    %203 = vmatprep.subr.mxu0 0.0
    %204 = vmatpush1.msra.mxu0 %v99
    %205 = vmatprep.subr.mxu0 0.0
    %206 = vmatpush1.msra.mxu0 0.0
    %207 = vmatprep.subr.mxu0 0.0
    %208 = vmatpush1.msra.mxu0 0.0
    %209 = vmatprep.subr.mxu0 0.0
    %210 = vmatpush1.msra.mxu0 0.0
    %211 = vmatprep.subr.mxu0 0.0
    %212 = vmatpush1.msra.mxu0 0.0
    %213 = vmatprep.subr.mxu0 0.0
    %214 = vmatpush1.msra.mxu0 0.0
    %215 = vmatprep.subr.mxu0 0.0
    %216 = vmatpush1.msra.mxu0 0.0
    %217 = vmatprep.subr.mxu0 0.0
    %218 = vmatpush1.msra.mxu0 0.0
    %219 = vmatprep.subr.mxu0 0.0
    %220 = vmatpush1.msra.mxu0 0.0
    %221 = vmatprep.subr.mxu0 0.0
    %222 = vmatpush1.msra.mxu0 0.0
    %223 = vmatprep.subr.mxu0 0.0
    %224 = vmatpush1.msra.mxu0 0.0
    %225 = vmatprep.subr.mxu0 0.0
    %226 = vmatpush1.msra.mxu0 0.0
    %227 = vmatprep.subr.mxu0 0.0
    %228 = vmatpush1.msra.mxu0 0.0
    %229 = vmatprep.subr.mxu0 0.0
    %230 = vmatpush1.msra.mxu0 0.0
    %231 = vmatprep.subr.mxu0 0.0
    %232 = vmatpush1.msra.mxu0 0.0
    %233 = vmatprep.subr.mxu0 0.0
    %234 = vmatpush1.msra.mxu0 0.0
    %235 = vmatprep.subr.mxu0 0.0
    %236 = vmatpush1.msra.mxu0 0.0
    %237 = vmatprep.subr.mxu0 0.0
    %238 = vmatpush1.msra.mxu0 0.0
    %239 = vmatprep.subr.mxu0 0.0
    %240 = vmatpush1.msra.mxu0 0.0
    %241 = vmatprep.subr.mxu0 0.0
    %242 = vmatpush1.msra.mxu0 0.0
    %243 = vmatprep.subr.mxu0 0.0
    %244 = vmatpush1.msra.mxu0 0.0
    %245 = vmatprep.subr.mxu0 0.0
    %246 = vmatpush1.msra.mxu0 0.0
    %247 = vmatprep.subr.mxu0 0.0
    %248 = vmatpush1.msra.mxu0 0.0
    %249 = vmatprep.subr.mxu0 0.0
    %250 = vmatpush1.msra.mxu0 0.0
    %251 = vmatprep.subr.mxu0 0.0
    %252 = vmatpush1.msra.mxu0 0.0
    %253 = vmatprep.subr.mxu0 0.0
    %254 = vmatpush1.msra.mxu0 0.0
    %255 = vmatprep.subr.mxu0 0.0
    %256 = vmatpush1.msra.mxu0 0.0
    %257 = vmatprep.subr.mxu0 0.0
    %258 = vmatpush1.msra.mxu0 0.0
    %259 = vmatprep.subr.mxu0 0.0
    %260 = vmatpush1.msra.mxu0 0.0
    %261 = vmatprep.mubr.f32.mxu0 0.0
    %262 = vmatmul.mubr.f32.gmra.mrb[0].mxu0 %v102
    %v263 = vpop.f32.mrb[0].mxu0
    %v264 = vadd.f32 0.0, %v263
    %v265 = vpop.f32.mrb[0].mxu0
    %266 = vmatprep.mubr.f32.mxu0 0.0
    %267 = vmatmul.mubr.f32.gmra.mrb[0].mxu0 %v105
    %v268 = vpop.f32.mrb[0].mxu0
    %v269 = vadd.f32 0.0, %v268
    %v270 = vpop.f32.mrb[0].mxu0
    %271 = vmatprep.mubr.f32.mxu0 0.0
    %272 = vmatmul.mubr.f32.gmra.mrb[0].mxu0 %v108
    %v273 = vpop.f32.mrb[0].mxu0
    %v274 = vadd.f32 0.0, %v273
    %v275 = vpop.f32.mrb[0].mxu0
    %276 = vmatprep.mubr.f32.mxu0 0.0
    %277 = vmatmul.mubr.f32.gmra.mrb[0].mxu0 %v111
    %v278 = vpop.f32.mrb[0].mxu0
    %v279 = vadd.f32 0.0, %v278
    %v280 = vpop.f32.mrb[0].mxu0
    %281 = vmatprep.mubr.f32.mxu0 0.0
    %282 = vmatmul.mubr.f32.gmra.mrb[0].mxu0 %v114
    %v283 = vpop.f32.mrb[0].mxu0
    %v284 = vadd.f32 0.0, %v283
    %v285 = vpop.f32.mrb[0].mxu0
    %286 = vmatprep.mubr.f32.mxu0 0.0
    %287 = vmatmul.mubr.f32.gmra.mrb[0].mxu0 %v117
    %v288 = vpop.f32.mrb[0].mxu0
    %v289 = vadd.f32 0.0, %v288
    %v290 = vpop.f32.mrb[0].mxu0
    %291 = vmatprep.mubr.f32.mxu0 0.0
    %292 = vmatmul.mubr.f32.gmra.mrb[0].mxu0 %v120
    %v293 = vpop.f32.mrb[0].mxu0
    %v294 = vadd.f32 0.0, %v293
    %v295 = vpop.f32.mrb[0].mxu0
    %296 = vmatprep.mubr.f32.mxu0 0.0
    %297 = vmatmul.mubr.f32.gmra.mrb[0].mxu0 %v123
    %v298 = vpop.f32.mrb[0].mxu0
    %v299 = vadd.f32 0.0, %v298
    %v300 = vpop.f32.mrb[0].mxu0
    %301 = vmatprep.mubr.f32.mxu0 0.0
    %302 = vmatmul.mubr.f32.gmra.mrb[0].mxu0 %v126
    %v303 = vpop.f32.mrb[0].mxu0
    %v304 = vadd.f32 0.0, %v303
    %v305 = vpop.f32.mrb[0].mxu0
    %306 = vmatprep.mubr.f32.mxu0 0.0
    %307 = vmatmul.mubr.f32.gmra.mrb[0].mxu0 %v129
    %v308 = vpop.f32.mrb[0].mxu0
    %v309 = vadd.f32 0.0, %v308
    %v310 = vpop.f32.mrb[0].mxu0
    %311 = vmatprep.mubr.f32.mxu0 0.0
    %312 = vmatmul.mubr.f32.gmra.mrb[0].mxu0 %v132
    %v313 = vpop.f32.mrb[0].mxu0
    %v314 = vadd.f32 0.0, %v313
    %v315 = vpop.f32.mrb[0].mxu0
    %316 = vmatprep.mubr.f32.mxu0 0.0
    %317 = vmatmul.mubr.f32.gmra.mrb[0].mxu0 %v135
    %v318 = vpop.f32.mrb[0].mxu0
    %v319 = vadd.f32 0.0, %v318
    %v320 = vpop.f32.mrb[0].mxu0
    %321 = vmatprep.mubr.f32.mxu0 0.0
    %322 = vmatmul.mubr.f32.gmra.mrb[0].mxu0 %v138
    %v323 = vpop.f32.mrb[0].mxu0
    %v324 = vadd.f32 0.0, %v323
    %v325 = vpop.f32.mrb[0].mxu0
    %326 = vmatprep.mubr.f32.mxu0 0.0
    %327 = vmatmul.mubr.f32.gmra.mrb[0].mxu0 %v141
    %v328 = vpop.f32.mrb[0].mxu0
    %v329 = vadd.f32 0.0, %v328
    %v330 = vpop.f32.mrb[0].mxu0
    %331 = vmatprep.mubr.f32.mxu0 0.0
    %332 = vmatmul.mubr.f32.gmra.mrb[0].mxu0 %v144
    %v333 = vpop.f32.mrb[0].mxu0
    %v334 = vadd.f32 0.0, %v333
    %v335 = vpop.f32.mrb[0].mxu0
    %336 = vmatprep.mubr.f32.mxu0 0.0
    %337 = vmatmul.mubr.f32.gmra.mrb[0].mxu0 %v147
    %v338 = vpop.f32.mrb[0].mxu0
    %v339 = vadd.f32 0.0, %v338
    %v340 = vpop.f32.mrb[0].mxu0
    %341 = vmatprep.mubr.f32.mxu0 0.0
    %342 = vmatmul.mubr.f32.gmra.mrb[0].mxu0 %v150
    %v343 = vpop.f32.mrb[0].mxu0
    %v344 = vadd.f32 0.0, %v343
    %v345 = vpop.f32.mrb[0].mxu0
    %346 = vmatprep.mubr.f32.mxu0 0.0
    %347 = vmatmul.mubr.f32.gmra.mrb[0].mxu0 %v153
    %v348 = vpop.f32.mrb[0].mxu0
    %v349 = vadd.f32 0.0, %v348
    %v350 = vpop.f32.mrb[0].mxu0
    %351 = vmatprep.mubr.f32.mxu0 0.0
    %352 = vmatmul.mubr.f32.gmra.mrb[0].mxu0 %v156
    %v353 = vpop.f32.mrb[0].mxu0
    %v354 = vadd.f32 0.0, %v353
    %v355 = vpop.f32.mrb[0].mxu0
    %356 = vmatprep.mubr.f32.mxu0 0.0
    %357 = vmatmul.mubr.f32.gmra.mrb[0].mxu0 %v159
    %v358 = vpop.f32.mrb[0].mxu0
    %v359 = vadd.f32 0.0, %v358
    %v360 = vpop.f32.mrb[0].mxu0
    %361 = vmatprep.mubr.f32.mxu0 0.0
    %362 = vmatmul.mubr.f32.gmra.mrb[0].mxu0 %v162
    %v363 = vpop.f32.mrb[0].mxu0
    %v364 = vadd.f32 0.0, %v363
    %v365 = vpop.f32.mrb[0].mxu0
    %366 = vmatprep.mubr.f32.mxu0 0.0
    %367 = vmatmul.mubr.f32.gmra.mrb[0].mxu0 %v165
    %v368 = vpop.f32.mrb[0].mxu0
    %v369 = vadd.f32 0.0, %v368
    %v370 = vpop.f32.mrb[0].mxu0
    %371 = vmatprep.mubr.f32.mxu0 0.0
    %372 = vmatmul.mubr.f32.gmra.mrb[0].mxu0 %v168
    %v373 = vpop.f32.mrb[0].mxu0
    %v374 = vadd.f32 0.0, %v373
    %v375 = vpop.f32.mrb[0].mxu0
    %376 = vmatprep.mubr.f32.mxu0 0.0
    %377 = vmatmul.mubr.f32.gmra.mrb[0].mxu0 %v171
    %v378 = vpop.f32.mrb[0].mxu0
    %v379 = vadd.f32 0.0, %v378
    %v380 = vpop.f32.mrb[0].mxu0
    %381 = vmatprep.mubr.f32.mxu0 0.0
    %382 = vmatmul.mubr.f32.gmra.mrb[0].mxu0 %v174
    %v383 = vpop.f32.mrb[0].mxu0
    %v384 = vadd.f32 0.0, %v383
    %v385 = vpop.f32.mrb[0].mxu0
    %386 = vmatprep.mubr.f32.mxu0 0.0
    %387 = vmatmul.mubr.f32.gmra.mrb[0].mxu0 %v177
    %v388 = vpop.f32.mrb[0].mxu0
    %v389 = vadd.f32 0.0, %v388
    %v390 = vpop.f32.mrb[0].mxu0
    %391 = vmatprep.mubr.f32.mxu0 0.0
    %392 = vmatmul.mubr.f32.gmra.mrb[0].mxu0 %v180
    %v393 = vpop.f32.mrb[0].mxu0
    %v394 = vadd.f32 0.0, %v393
    %v395 = vpop.f32.mrb[0].mxu0
    %396 = vmatprep.mubr.f32.mxu0 0.0
    %397 = vmatmul.mubr.f32.gmra.mrb[0].mxu0 %v183
    %v398 = vpop.f32.mrb[0].mxu0
    %v399 = vadd.f32 0.0, %v398
    %v400 = vpop.f32.mrb[0].mxu0
    %401 = vmatprep.mubr.f32.mxu0 0.0
    %402 = vmatmul.mubr.f32.gmra.mrb[0].mxu0 %v186
    %v403 = vpop.f32.mrb[0].mxu0
    %v404 = vadd.f32 0.0, %v403
    %v405 = vpop.f32.mrb[0].mxu0
    %406 = vmatprep.mubr.f32.mxu0 0.0
    %407 = vmatmul.mubr.f32.gmra.mrb[0].mxu0 %v189
    %v408 = vpop.f32.mrb[0].mxu0
    %v409 = vadd.f32 0.0, %v408
    %v410 = vpop.f32.mrb[0].mxu0
    %411 = vmatprep.mubr.f32.mxu0 0.0
    %412 = vmatmul.mubr.f32.gmra.mrb[0].mxu0 %v192
    %v413 = vpop.f32.mrb[0].mxu0
    %v414 = vadd.f32 0.0, %v413
    %v415 = vpop.f32.mrb[0].mxu0
    %416 = vmatprep.mubr.f32.mxu0 0.0
    %417 = vmatmul.mubr.f32.gmra.mrb[0].mxu0 %v195
    %v418 = vpop.f32.mrb[0].mxu0
    %v419 = vadd.f32 0.0, %v418
    %v420 = vpop.f32.mrb[0].mxu0
    %421 = vdwg.mxu0
    %v422 = vld [vmem:[%s1] sm:$0xff]
    %v423 = vld [vmem:[%s1 + $0x8] sm:$0xff]
    %v424 = vld [vmem:[%s1 + $0x10] sm:$0xff]
    %v425 = vld [vmem:[%s1 + $0x18] sm:$0xff]
    %v426 = vld [vmem:[#allocation6] sm:$0xff]
    %v427 = vld [vmem:[#allocation6 + $0x8] sm:$0xff]
    %v428 = vld [vmem:[#allocation6 + $0x10] sm:$0xff]
    %v429 = vld [vmem:[#allocation6 + $0x18] sm:$0xff]
    %v431 = vsel %vm100, %v422, 0
    %v434 = vsel %vm100, %v423, 0
    %v437 = vsel %vm100, %v424, 0
    %v440 = vsel %vm100, %v425, 0
    %442 = vmatprep.subr.mxu0 0.0
    %443 = vmatpush1.msra.mxu0 %v426
    %444 = vmatprep.subr.mxu0 0.0
    %445 = vmatpush1.msra.mxu0 %v427
    %446 = vmatprep.subr.mxu0 0.0
    %447 = vmatpush1.msra.mxu0 %v428
    %448 = vmatprep.subr.mxu0 0.0
    %449 = vmatpush1.msra.mxu0 %v429
    %450 = vmatprep.subr.mxu0 0.0
    %451 = vmatpush1.msra.mxu0 0.0
    %452 = vmatprep.subr.mxu0 0.0
    %453 = vmatpush1.msra.mxu0 0.0
    %454 = vmatprep.subr.mxu0 0.0
    %455 = vmatpush1.msra.mxu0 0.0
    %456 = vmatprep.subr.mxu0 0.0
    %457 = vmatpush1.msra.mxu0 0.0
    %458 = vmatprep.subr.mxu0 0.0
    %459 = vmatpush1.msra.mxu0 0.0
    %460 = vmatprep.subr.mxu0 0.0
    %461 = vmatpush1.msra.mxu0 0.0
    %462 = vmatprep.subr.mxu0 0.0
    %463 = vmatpush1.msra.mxu0 0.0
    %464 = vmatprep.subr.mxu0 0.0
    %465 = vmatpush1.msra.mxu0 0.0
    %466 = vmatprep.subr.mxu0 0.0
    %467 = vmatpush1.msra.mxu0 0.0
    %468 = vmatprep.subr.mxu0 0.0
    %469 = vmatpush1.msra.mxu0 0.0
    %470 = vmatprep.subr.mxu0 0.0
    %471 = vmatpush1.msra.mxu0 0.0
    %472 = vmatprep.subr.mxu0 0.0
    %473 = vmatpush1.msra.mxu0 0.0
    %474 = vmatprep.subr.mxu0 0.0
    %475 = vmatpush1.msra.mxu0 0.0
    %476 = vmatprep.subr.mxu0 0.0
    %477 = vmatpush1.msra.mxu0 0.0
    %478 = vmatprep.subr.mxu0 0.0
    %479 = vmatpush1.msra.mxu0 0.0
    %480 = vmatprep.subr.mxu0 0.0
    %481 = vmatpush1.msra.mxu0 0.0
    %482 = vmatprep.subr.mxu0 0.0
    %483 = vmatpush1.msra.mxu0 0.0
    %484 = vmatprep.subr.mxu0 0.0
    %485 = vmatpush1.msra.mxu0 0.0
    %486 = vmatprep.subr.mxu0 0.0
    %487 = vmatpush1.msra.mxu0 0.0
    %488 = vmatprep.subr.mxu0 0.0
    %489 = vmatpush1.msra.mxu0 0.0
    %490 = vmatprep.subr.mxu0 0.0
    %491 = vmatpush1.msra.mxu0 0.0
    %492 = vmatprep.subr.mxu0 0.0
    %493 = vmatpush1.msra.mxu0 0.0
    %494 = vmatprep.subr.mxu0 0.0
    %495 = vmatpush1.msra.mxu0 0.0
    %496 = vmatprep.subr.mxu0 0.0
    %497 = vmatpush1.msra.mxu0 0.0
    %498 = vmatprep.subr.mxu0 0.0
    %499 = vmatpush1.msra.mxu0 0.0
    %500 = vmatprep.subr.mxu0 0.0
    %501 = vmatpush1.msra.mxu0 0.0
    %502 = vmatprep.subr.mxu0 0.0
    %503 = vmatpush1.msra.mxu0 0.0
    %504 = vmatprep.subr.mxu0 0.0
    %505 = vmatpush1.msra.mxu0 0.0
    %506 = vmatprep.mubr.f32.mxu0 0.0
    %507 = vmatmul.mubr.f32.gmra.mrb[0].mxu0 %v431
    %v508 = vpop.f32.mrb[0].mxu0
    %v509 = vadd.f32 0.0, %v508
    %v510 = vpop.f32.mrb[0].mxu0
    %511 = vmatprep.mubr.f32.mxu0 0.0
    %512 = vmatmul.mubr.f32.gmra.mrb[0].mxu0 %v434
    %v513 = vpop.f32.mrb[0].mxu0
    %v514 = vadd.f32 0.0, %v513
    %v515 = vpop.f32.mrb[0].mxu0
    %516 = vmatprep.mubr.f32.mxu0 0.0
    %517 = vmatmul.mubr.f32.gmra.mrb[0].mxu0 %v437
    %v518 = vpop.f32.mrb[0].mxu0
    %v519 = vadd.f32 0.0, %v518
    %v520 = vpop.f32.mrb[0].mxu0
    %521 = vmatprep.mubr.f32.mxu0 0.0
    %522 = vmatmul.mubr.f32.gmra.mrb[0].mxu0 %v440
    %v523 = vpop.f32.mrb[0].mxu0
    %v524 = vadd.f32 0.0, %v523
    %v525 = vpop.f32.mrb[0].mxu0
    %526 = vdwg.mxu0
    %v527 = vadd.f32 %v264, %v509
    %v528 = vadd.f32 %v269, %v514
    %v529 = vadd.f32 %v274, %v519
    %v530 = vadd.f32 %v279, %v524
    %v531 = vadd.f32 %v284, %v509
    %v532 = vadd.f32 %v289, %v514
    %v533 = vadd.f32 %v294, %v519
    %v534 = vadd.f32 %v299, %v524
    %v535 = vadd.f32 %v304, %v509
    %v536 = vadd.f32 %v309, %v514
    %v537 = vadd.f32 %v314, %v519
    %v538 = vadd.f32 %v319, %v524
    %v539 = vadd.f32 %v324, %v509
    %v540 = vadd.f32 %v329, %v514
    %v541 = vadd.f32 %v334, %v519
    %v542 = vadd.f32 %v339, %v524
    %v543 = vadd.f32 %v344, %v509
    %v544 = vadd.f32 %v349, %v514
    %v545 = vadd.f32 %v354, %v519
    %v546 = vadd.f32 %v359, %v524
    %v547 = vadd.f32 %v364, %v509
    %v548 = vadd.f32 %v369, %v514
    %v549 = vadd.f32 %v374, %v519
    %v550 = vadd.f32 %v379, %v524
    %v551 = vadd.f32 %v384, %v509
    %v552 = vadd.f32 %v389, %v514
    %v553 = vadd.f32 %v394, %v519
    %v554 = vadd.f32 %v399, %v524
    %v555 = vadd.f32 %v404, %v509
    %v556 = vadd.f32 %v409, %v514
    %v557 = vadd.f32 %v414, %v519
    %v558 = vadd.f32 %v419, %v524
    %v559 = vtanh.pop %v527
    %v560 = vtanh.pop %v528
    %v561 = vtanh.pop %v529
    %v562 = vtanh.pop %v530
    %v563 = vtanh.pop %v531
    %v564 = vtanh.pop %v532
    %v565 = vtanh.pop %v533
    %v566 = vtanh.pop %v534
    %v567 = vtanh.pop %v535
    %v568 = vtanh.pop %v536
    %v569 = vtanh.pop %v537
    %v570 = vtanh.pop %v538
    %v571 = vtanh.pop %v539
    %v572 = vtanh.pop %v540
    %v573 = vtanh.pop %v541
    %v574 = vtanh.pop %v542
    %v575 = vtanh.pop %v543
    %v576 = vtanh.pop %v544
    %v577 = vtanh.pop %v545
    %v578 = vtanh.pop %v546
    %v579 = vtanh.pop %v547
    %v580 = vtanh.pop %v548
    %v581 = vtanh.pop %v549
    %v582 = vtanh.pop %v550
    %v583 = vtanh.pop %v551
    %v584 = vtanh.pop %v552
    %v585 = vtanh.pop %v553
    %v586 = vtanh.pop %v554
    %v587 = vtanh.pop %v555
    %v588 = vtanh.pop %v556
    %v589 = vtanh.pop %v557
    %v590 = vtanh.pop %v558
    %v591 = vld [vmem:[%s4] sm:$0x1]
    %v593 = vlaneseq
    %v594 = vshrl.u32 %v593, 7
    %v595 = vsub.s32 0, %v594
    %v596 = vrot.slane %v591, %v595
    %v598 = vmul.f32 %v559, %v596
    %v599 = vmul.f32 %v560, %v596
    %v600 = vmul.f32 %v561, %v596
    %v601 = vmul.f32 %v562, %v596
    %v602 = vmul.f32 %v563, %v596
    %v603 = vmul.f32 %v564, %v596
    %v604 = vmul.f32 %v565, %v596
    %v605 = vmul.f32 %v566, %v596
    %v606 = vmul.f32 %v567, %v596
    %v607 = vmul.f32 %v568, %v596
    %v608 = vmul.f32 %v569, %v596
    %v609 = vmul.f32 %v570, %v596
    %v610 = vmul.f32 %v571, %v596
    %v611 = vmul.f32 %v572, %v596
    %v612 = vmul.f32 %v573, %v596
    %v613 = vmul.f32 %v574, %v596
    %v614 = vmul.f32 %v575, %v596
    %v615 = vmul.f32 %v576, %v596
    %v616 = vmul.f32 %v577, %v596
    %v617 = vmul.f32 %v578, %v596
    %v618 = vmul.f32 %v579, %v596
    %v619 = vmul.f32 %v580, %v596
    %v620 = vmul.f32 %v581, %v596
    %v621 = vmul.f32 %v582, %v596
    %v622 = vmul.f32 %v583, %v596
    %v623 = vmul.f32 %v584, %v596
    %v624 = vmul.f32 %v585, %v596
    %v625 = vmul.f32 %v586, %v596
    %v626 = vmul.f32 %v587, %v596
    %v627 = vmul.f32 %v588, %v596
    %v628 = vmul.f32 %v589, %v596
    %v629 = vmul.f32 %v590, %v596
    %630 = vadd.xlane.f32.xlu0 %v598
    %v631 = vpop.xlane.xlu0 %630
    %632 = vadd.xlane.f32.xlu0 %v599
    %v633 = vpop.xlane.xlu0 %632
    %634 = vadd.xlane.f32.xlu0 %v600
    %v635 = vpop.xlane.xlu0 %634
    %636 = vadd.xlane.f32.xlu0 %v601
    %v637 = vpop.xlane.xlu0 %636
    %638 = vadd.xlane.f32.xlu0 %v602
    %v639 = vpop.xlane.xlu0 %638
    %640 = vadd.xlane.f32.xlu0 %v603
    %v641 = vpop.xlane.xlu0 %640
    %642 = vadd.xlane.f32.xlu0 %v604
    %v643 = vpop.xlane.xlu0 %642
    %644 = vadd.xlane.f32.xlu0 %v605
    %v645 = vpop.xlane.xlu0 %644
    %646 = vadd.xlane.f32.xlu0 %v606
    %v647 = vpop.xlane.xlu0 %646
    %648 = vadd.xlane.f32.xlu0 %v607
    %v649 = vpop.xlane.xlu0 %648
    %650 = vadd.xlane.f32.xlu0 %v608
    %v651 = vpop.xlane.xlu0 %650
    %652 = vadd.xlane.f32.xlu0 %v609
    %v653 = vpop.xlane.xlu0 %652
    %654 = vadd.xlane.f32.xlu0 %v610
    %v655 = vpop.xlane.xlu0 %654
    %656 = vadd.xlane.f32.xlu0 %v611
    %v657 = vpop.xlane.xlu0 %656
    %658 = vadd.xlane.f32.xlu0 %v612
    %v659 = vpop.xlane.xlu0 %658
    %660 = vadd.xlane.f32.xlu0 %v613
    %v661 = vpop.xlane.xlu0 %660
    %662 = vadd.xlane.f32.xlu0 %v614
    %v663 = vpop.xlane.xlu0 %662
    %664 = vadd.xlane.f32.xlu0 %v615
    %v665 = vpop.xlane.xlu0 %664
    %666 = vadd.xlane.f32.xlu0 %v616
    %v667 = vpop.xlane.xlu0 %666
    %668 = vadd.xlane.f32.xlu0 %v617
    %v669 = vpop.xlane.xlu0 %668
    %670 = vadd.xlane.f32.xlu0 %v618
    %v671 = vpop.xlane.xlu0 %670
    %672 = vadd.xlane.f32.xlu0 %v619
    %v673 = vpop.xlane.xlu0 %672
    %674 = vadd.xlane.f32.xlu0 %v620
    %v675 = vpop.xlane.xlu0 %674
    %676 = vadd.xlane.f32.xlu0 %v621
    %v677 = vpop.xlane.xlu0 %676
    %678 = vadd.xlane.f32.xlu0 %v622
    %v679 = vpop.xlane.xlu0 %678
    %680 = vadd.xlane.f32.xlu0 %v623
    %v681 = vpop.xlane.xlu0 %680
    %682 = vadd.xlane.f32.xlu0 %v624
    %v683 = vpop.xlane.xlu0 %682
    %684 = vadd.xlane.f32.xlu0 %v625
    %v685 = vpop.xlane.xlu0 %684
    %686 = vadd.xlane.f32.xlu0 %v626
    %v687 = vpop.xlane.xlu0 %686
    %688 = vadd.xlane.f32.xlu0 %v627
    %v689 = vpop.xlane.xlu0 %688
    %690 = vadd.xlane.f32.xlu0 %v628
    %v691 = vpop.xlane.xlu0 %690
    %692 = vadd.xlane.f32.xlu0 %v629
    %v693 = vpop.xlane.xlu0 %692
    %v726 = vlaneseq
    %v727 = vand.u32 %v726, 127
    %v728 = vlaneseq
    %v729 = vshrl.u32 %v728, 7
    %v730 = vsub.s32 %v727, %v729
    %v731 = vrot.slane %v631, %v730
    %v732 = vadd.s32 %v727, 4294967288
    %v733 = vlaneseq
    %v734 = vshrl.u32 %v733, 7
    %v735 = vsub.s32 %v732, %v734
    %v736 = vrot.slane %v633, %v735
    %vm737 = vcmask 130112
    %v738 = vsel %vm737, %v736, %v731
    %v739 = vadd.s32 %v727, 4294967280
    %v740 = vlaneseq
    %v741 = vshrl.u32 %v740, 7
    %v742 = vsub.s32 %v739, %v741
    %v743 = vrot.slane %v635, %v742
    %vm744 = vcmask 195712
    %v745 = vsel %vm744, %v743, %v738
    %v746 = vadd.s32 %v727, 4294967272
    %v747 = vlaneseq
    %v748 = vshrl.u32 %v747, 7
    %v749 = vsub.s32 %v746, %v748
    %v750 = vrot.slane %v637, %v749
    %vm751 = vcmask 261312
    %v752 = vsel %vm751, %v750, %v745
    %v753 = vlaneseq
    %v754 = vshrl.u32 %v753, 7
    %v755 = vsub.s32 %v727, %v754
    %v756 = vrot.slane %v639, %v755
    %v757 = vlaneseq
    %v758 = vshrl.u32 %v757, 7
    %v759 = vsub.s32 %v732, %v758
    %v760 = vrot.slane %v641, %v759
    %v761 = vsel %vm737, %v760, %v756
    %v762 = vlaneseq
    %v763 = vshrl.u32 %v762, 7
    %v764 = vsub.s32 %v739, %v763
    %v765 = vrot.slane %v643, %v764
    %v766 = vsel %vm744, %v765, %v761
    %v767 = vlaneseq
    %v768 = vshrl.u32 %v767, 7
    %v769 = vsub.s32 %v746, %v768
    %v770 = vrot.slane %v645, %v769
    %v771 = vsel %vm751, %v770, %v766
    %v772 = vlaneseq
    %v773 = vshrl.u32 %v772, 7
    %v774 = vsub.s32 %v727, %v773
    %v775 = vrot.slane %v647, %v774
    %v776 = vlaneseq
    %v777 = vshrl.u32 %v776, 7
    %v778 = vsub.s32 %v732, %v777
    %v779 = vrot.slane %v649, %v778
    %v780 = vsel %vm737, %v779, %v775
    %v781 = vlaneseq
    %v782 = vshrl.u32 %v781, 7
    %v783 = vsub.s32 %v739, %v782
    %v784 = vrot.slane %v651, %v783
    %v785 = vsel %vm744, %v784, %v780
    %v786 = vlaneseq
    %v787 = vshrl.u32 %v786, 7
    %v788 = vsub.s32 %v746, %v787
    %v789 = vrot.slane %v653, %v788
    %v790 = vsel %vm751, %v789, %v785
    %v791 = vlaneseq
    %v792 = vshrl.u32 %v791, 7
    %v793 = vsub.s32 %v727, %v792
    %v794 = vrot.slane %v655, %v793
    %v795 = vlaneseq
    %v796 = vshrl.u32 %v795, 7
    %v797 = vsub.s32 %v732, %v796
    %v798 = vrot.slane %v657, %v797
    %v799 = vsel %vm737, %v798, %v794
    %v800 = vlaneseq
    %v801 = vshrl.u32 %v800, 7
    %v802 = vsub.s32 %v739, %v801
    %v803 = vrot.slane %v659, %v802
    %v804 = vsel %vm744, %v803, %v799
    %v805 = vlaneseq
    %v806 = vshrl.u32 %v805, 7
    %v807 = vsub.s32 %v746, %v806
    %v808 = vrot.slane %v661, %v807
    %v809 = vsel %vm751, %v808, %v804
    %v810 = vlaneseq
    %v811 = vshrl.u32 %v810, 7
    %v812 = vsub.s32 %v727, %v811
    %v813 = vrot.slane %v663, %v812
    %v814 = vlaneseq
    %v815 = vshrl.u32 %v814, 7
    %v816 = vsub.s32 %v732, %v815
    %v817 = vrot.slane %v665, %v816
    %v818 = vsel %vm737, %v817, %v813
    %v819 = vlaneseq
    %v820 = vshrl.u32 %v819, 7
    %v821 = vsub.s32 %v739, %v820
    %v822 = vrot.slane %v667, %v821
    %v823 = vsel %vm744, %v822, %v818
    %v824 = vlaneseq
    %v825 = vshrl.u32 %v824, 7
    %v826 = vsub.s32 %v746, %v825
    %v827 = vrot.slane %v669, %v826
    %v828 = vsel %vm751, %v827, %v823
    %v829 = vlaneseq
    %v830 = vshrl.u32 %v829, 7
    %v831 = vsub.s32 %v727, %v830
    %v832 = vrot.slane %v671, %v831
    %v833 = vlaneseq
    %v834 = vshrl.u32 %v833, 7
    %v835 = vsub.s32 %v732, %v834
    %v836 = vrot.slane %v673, %v835
    %v837 = vsel %vm737, %v836, %v832
    %v838 = vlaneseq
    %v839 = vshrl.u32 %v838, 7
    %v840 = vsub.s32 %v739, %v839
    %v841 = vrot.slane %v675, %v840
    %v842 = vsel %vm744, %v841, %v837
    %v843 = vlaneseq
    %v844 = vshrl.u32 %v843, 7
    %v845 = vsub.s32 %v746, %v844
    %v846 = vrot.slane %v677, %v845
    %v847 = vsel %vm751, %v846, %v842
    %v848 = vlaneseq
    %v849 = vshrl.u32 %v848, 7
    %v850 = vsub.s32 %v727, %v849
    %v851 = vrot.slane %v679, %v850
    %v852 = vlaneseq
    %v853 = vshrl.u32 %v852, 7
    %v854 = vsub.s32 %v732, %v853
    %v855 = vrot.slane %v681, %v854
    %v856 = vsel %vm737, %v855, %v851
    %v857 = vlaneseq
    %v858 = vshrl.u32 %v857, 7
    %v859 = vsub.s32 %v739, %v858
    %v860 = vrot.slane %v683, %v859
    %v861 = vsel %vm744, %v860, %v856
    %v862 = vlaneseq
    %v863 = vshrl.u32 %v862, 7
    %v864 = vsub.s32 %v746, %v863
    %v865 = vrot.slane %v685, %v864
    %v866 = vsel %vm751, %v865, %v861
    %v867 = vlaneseq
    %v868 = vshrl.u32 %v867, 7
    %v869 = vsub.s32 %v727, %v868
    %v870 = vrot.slane %v687, %v869
    %v871 = vlaneseq
    %v872 = vshrl.u32 %v871, 7
    %v873 = vsub.s32 %v732, %v872
    %v874 = vrot.slane %v689, %v873
    %v875 = vsel %vm737, %v874, %v870
    %v876 = vlaneseq
    %v877 = vshrl.u32 %v876, 7
    %v878 = vsub.s32 %v739, %v877
    %v879 = vrot.slane %v691, %v878
    %v880 = vsel %vm744, %v879, %v875
    %v881 = vlaneseq
    %v882 = vshrl.u32 %v881, 7
    %v883 = vsub.s32 %v746, %v882
    %v884 = vrot.slane %v693, %v883
    %v885 = vsel %vm751, %v884, %v880
    %vm886 = vcmask 1041409
    %v887 = vsel %vm886, %v771, %v752
    %vm888 = vcmask 1042434
    %v889 = vsel %vm888, %v790, %v887
    %vm890 = vcmask 1043459
    %v891 = vsel %vm890, %v809, %v889
    %vm892 = vcmask 1044484
    %v893 = vsel %vm892, %v828, %v891
    %vm894 = vcmask 1045509
    %v895 = vsel %vm894, %v847, %v893
    %vm896 = vcmask 1046534
    %v897 = vsel %vm896, %v866, %v895
    %vm898 = vcmask 1047559
    %v899 = vsel %vm898, %v885, %v897
    %901 = vxpose.xlu0.b32.start [1/16] %v899, 128
    %902 = vxpose.xlu0.b32.cont [2/16] 0.0, 128
    %903 = vxpose.xlu0.b32.cont [3/16] 0.0, 128
    %904 = vxpose.xlu0.b32.cont [4/16] 0.0, 128
    %905 = vxpose.xlu0.b32.cont [5/16] 0.0, 128
    %906 = vxpose.xlu0.b32.cont [6/16] 0.0, 128
    %907 = vxpose.xlu0.b32.cont [7/16] 0.0, 128
    %908 = vxpose.xlu0.b32.cont [8/16] 0.0, 128
    %909 = vxpose.xlu0.b32.cont [9/16] 0.0, 128
    %910 = vxpose.xlu0.b32.cont [10/16] 0.0, 128
    %911 = vxpose.xlu0.b32.cont [11/16] 0.0, 128
    %912 = vxpose.xlu0.b32.cont [12/16] 0.0, 128
    %913 = vxpose.xlu0.b32.cont [13/16] 0.0, 128
    %914 = vxpose.xlu0.b32.cont [14/16] 0.0, 128
    %915 = vxpose.xlu0.b32.cont [15/16] 0.0, 128
    %916 = vxpose.xlu0.b32.end [16/16] 0.0, 128
    %v917 = vpop.trf.xlu0
    %v918 = vpop.trf.xlu0
    %v919 = vpop.trf.xlu0
    %v920 = vpop.trf.xlu0
    %v921 = vpop.trf.xlu0
    %v922 = vpop.trf.xlu0
    %v923 = vpop.trf.xlu0
    %v924 = vpop.trf.xlu0
    %v925 = vpop.trf.xlu0
    %v926 = vpop.trf.xlu0
    %v927 = vpop.trf.xlu0
    %v928 = vpop.trf.xlu0
    %v929 = vpop.trf.xlu0
    %v930 = vpop.trf.xlu0
    %v931 = vpop.trf.xlu0
    %v932 = vpop.trf.xlu0
    %v933 = vld [vmem:[%s5] sm:$0xff]
    %v934 = vld [vmem:[%s5 + $0x8] sm:$0xff]
    %v935 = vld [vmem:[%s5 + $0x10] sm:$0xff]
    %v936 = vld [vmem:[%s5 + $0x18] sm:$0xff]
    %937 = vset.pattern.permute.xlu0 0
    %938 = vperm.xlu0 %937, %v933
    %v939 = vpop.permute.xlu0 %938
    %940 = vset.pattern.permute.xlu0 0
    %941 = vperm.xlu0 %940, %v934
    %v942 = vpop.permute.xlu0 %941
    %943 = vset.pattern.permute.xlu0 0
    %944 = vperm.xlu0 %943, %v935
    %v945 = vpop.permute.xlu0 %944
    %946 = vset.pattern.permute.xlu0 0
    %947 = vperm.xlu0 %946, %v936
    %v948 = vpop.permute.xlu0 %947
    %vm949 = vcmp.lt.s32.totalorder %v727, %v939
    %vm950 = vcmp.lt.s32.totalorder %v727, %v942
    %vm951 = vcmp.lt.s32.totalorder %v727, %v945
    %vm952 = vcmp.lt.s32.totalorder %v727, %v948
    %v953 = vsel %vm949, %v917, -inf
    %v954 = vsel %vm950, %v918, -inf
    %v955 = vsel %vm951, %v919, -inf
    %v956 = vsel %vm952, %v920, -inf
    %vm957 = vcmask 64512
    %958 = vst.msk [vmem:[%s6] sm:$0xff] %vm957, %v953
    %959 = vst.msk [vmem:[%s6 + $0x8] sm:$0xff] %vm957, %v954
    %960 = vst.msk [vmem:[%s6 + $0x10] sm:$0xff] %vm957, %v955
    %961 = vst.msk [vmem:[%s6 + $0x18] sm:$0xff] %vm957, %v956
    // Predicated region
    $region38: #{attention1_forward.1} parent=1 // pred_check
      _
    $region39: #{attention1_forward.1} parent=1 // pred_check_branch
      %963 = sbr.rel (0) target = $region41
    $region40: #{attention1_forward.1} parent=1 // pred_region
      _
    $region41: #{attention1_forward.1} parent=1 // pred_fallthru
      _
    // Predicated region
    $region42: #{attention1_forward.1} parent=1 // pred_check
      _
    $region43: #{attention1_forward.1} parent=1 // pred_check_branch
      %965 = sbr.rel (0) target = $region45
    $region44: #{attention1_forward.1} parent=1 // pred_region
      _
    $region45: #{attention1_forward.1} parent=1 // pred_fallthru
      _
    %966 = vsyncpa [#allocation3], 1
    %967 = vsyncpa [#allocation5], 1

</llo_original>
